<compile_context>
chip_gen: v7x
topology: tpu7x:2x2x1
jax: 0.10.0
libtpu: 0.0.40
codegen_flags: <defaults>
</compile_context>

<pallas_src>
import functools

import jax
import jax.numpy as jnp
from jax.experimental import pallas as pl
from jax.experimental.pallas import tpu as pltpu


def _focal_loss_kernel(x_ref, y_ref, out_ref, acc_ref, *,
                       batch, tile_b, alpha, gamma):
    pid = pl.program_id(0)

    @pl.when(pid == 0)
    def _init():
        acc_ref[...] = jnp.zeros_like(acc_ref)

    x = x_ref[...].astype(jnp.float32)        # (tile_b, C) logits
    y = y_ref[...]                            # (tile_b, 1) int32 labels
    tb, num_classes = x.shape

    # Numerically stable per-row log-sum-exp over the class (lane) axis.
    m = jnp.max(x, axis=1, keepdims=True)                                  # (tb, 1)
    lse = m + jnp.log(jnp.sum(jnp.exp(x - m), axis=1, keepdims=True))      # (tb, 1)

    # Target logit via iota==label mask (single extra VPU pass over the tile;
    # the class axis is already resident for the logsumexp).
    classes = jax.lax.broadcasted_iota(jnp.int32, (tb, num_classes), 1)
    tgt = jnp.sum(jnp.where(classes == y, x, 0.0), axis=1, keepdims=True)  # (tb, 1)

    ce_row = lse - tgt                                                     # (tb, 1)

    # Rows past the true batch size (partial final tile) contribute zero.
    row = pid * tile_b + jax.lax.broadcasted_iota(jnp.int32, (tb, 1), 0)
    ce_row = jnp.where(row < batch, ce_row, 0.0)

    # Running sum of per-row cross-entropy (persists across grid steps).
    acc_ref[...] += jnp.sum(ce_row, axis=0, keepdims=True)                 # (1, 1)

    @pl.when(pid == pl.num_programs(0) - 1)
    def _finalize():
        ce_mean = acc_ref[...] / jnp.float32(batch)      # CrossEntropyLoss (mean)
        pt = jnp.exp(-ce_mean)
        focal = jnp.float32(alpha) * (1.0 - pt) ** gamma * ce_mean
        out_ref[...] = focal


def focal_loss(logits, targets, *, alpha=1.0, gamma=2, tile_b=128):
    """logits: (B, C) float, targets: (B,) int -> scalar f32 focal loss."""
    B, C = logits.shape
    assert targets.shape[0] == B, "inputs.size(0) != targets.size(0)"

    # Tile the batch axis; keep block rows a multiple of 8 (sublane) or == B.
    if tile_b >= B:
        tile_b = B
    else:
        tile_b = max(8, (tile_b // 8) * 8)
        if tile_b >= B:
            tile_b = B

    targets2d = targets.astype(jnp.int32).reshape(B, 1)
    grid = (pl.cdiv(B, tile_b),)

    kernel = functools.partial(
        _focal_loss_kernel, batch=B, tile_b=tile_b, alpha=alpha, gamma=gamma)

    out = pl.pallas_call(
        kernel,
        out_shape=jax.ShapeDtypeStruct((1, 1), jnp.float32),
        grid_spec=pltpu.PrefetchScalarGridSpec(
            num_scalar_prefetch=0,
            grid=grid,
            in_specs=[
                pl.BlockSpec((tile_b, C), lambda i: (i, 0)),   # logits tile
                pl.BlockSpec((tile_b, 1), lambda i: (i, 0)),   # labels tile
            ],
            out_specs=pl.BlockSpec((1, 1), lambda i: (0, 0)),  # scalar loss
            scratch_shapes=[pltpu.VMEM((1, 1), jnp.float32)],  # CE accumulator
        ),
        compiler_params=pltpu.CompilerParams(
            dimension_semantics=("arbitrary",),  # running reduction over batch
        ),
    )(logits, targets2d)
    return out[0, 0]


def _ref_focal(logits, targets, alpha=1.0, gamma=2):
    lse = jax.nn.logsumexp(logits.astype(jnp.float32), axis=1)
    ce = jnp.mean(lse - logits[jnp.arange(logits.shape[0]), targets])
    pt = jnp.exp(-ce)
    return alpha * (1.0 - pt) ** gamma * ce


if __name__ == "__main__":
    key = jax.random.PRNGKey(0)
    k1, k2, k3, k4 = jax.random.split(key, 4)

    # Case 1: batch=16, classes=8, tile_b=8 -> 2 grid steps (exercises the
    # cross-step accumulator and the pl.when init/finalize).
    B, C = 16, 8
    logits = jax.random.normal(k1, (B, C), dtype=jnp.float32)
    targets = jax.random.randint(k2, (B,), 0, C, dtype=jnp.int32)

    loss = focal_loss(logits, targets, alpha=1.0, gamma=2, tile_b=8)
    jax.block_until_ready(loss)
    ref = _ref_focal(logits, targets, alpha=1.0, gamma=2)
    assert jnp.allclose(loss, ref, rtol=1e-5, atol=1e-6), (loss, ref)

    # Case 2: batch=13 (not a multiple of the tile) -> partial final tile,
    # exercises the row-validity mask.
    B2, C2 = 13, 10
    logits2 = jax.random.normal(k3, (B2, C2), dtype=jnp.float32)
    targets2 = jax.random.randint(k4, (B2,), 0, C2, dtype=jnp.int32)

    loss2 = focal_loss(logits2, targets2, alpha=1.0, gamma=2, tile_b=8)
    jax.block_until_ready(loss2)
    ref2 = _ref_focal(logits2, targets2, alpha=1.0, gamma=2)
    assert jnp.allclose(loss2, ref2, rtol=1e-5, atol=1e-6), (loss2, ref2)

    print("KERNEL_OK")
</pallas_src>

<mosaic_0001>
module attributes {stable_mosaic.version = 11 : i64} {
  func.func @_focal_loss_kernel(%arg0: i32, %arg1: memref<8x8xf32, #tpu.memory_space<vmem>>, %arg2: memref<8x1xi32, #tpu.memory_space<vmem>>, %arg3: memref<1x1xf32, #tpu.memory_space<vmem>>, %arg4: memref<1x1xf32, #tpu.memory_space<vmem>>) attributes {dimension_semantics = [#tpu.dimension_semantics<arbitrary>], iteration_bounds = array<i64: 2>, scalar_prefetch = 0 : i64, scratch_operands = 1 : i64, tpu.core_type = #tpu.core_type<tc>, window_params = [{transform_indices = @transform_0, window_bounds = array<i64: 8, 8>}, {transform_indices = @transform_1, window_bounds = array<i64: 8, 1>}, {pipeline_mode = #tpu.pipeline_mode<synchronous>, transform_indices = @transform_2, window_bounds = array<i64: 1, 1>}]} {
    %c0_i32 = arith.constant 0 : i32
    %0 = arith.cmpi eq, %arg0, %c0_i32 : i32
    %1 = arith.extui %0 : i1 to i32
    %c0_i32_0 = arith.constant 0 : i32
    %2 = arith.cmpi ne, %1, %c0_i32_0 : i32
    scf.if %2 {
      %cst_14 = arith.constant 0.000000e+00 : f32
      %38 = vector.broadcast %cst_14 : f32 to vector<1x1xf32>
      %c0_15 = arith.constant 0 : index
      %c0_16 = arith.constant 0 : index
      %39 = vector.load %arg4[%c0_15, %c0_16] : memref<1x1xf32, #tpu.memory_space<vmem>>, vector<1x1xf32>
      tpu.vector_store %arg4[%c0_15, %c0_16], %38 {strides = array<i32>} : memref<1x1xf32, #tpu.memory_space<vmem>>, vector<1x1xf32>,
    } else {
    }
    %c0 = arith.constant 0 : index
    %c0_1 = arith.constant 0 : index
    %3 = vector.load %arg1[%c0, %c0_1] : memref<8x8xf32, #tpu.memory_space<vmem>>, vector<8x8xf32>
    %c0_2 = arith.constant 0 : index
    %c0_3 = arith.constant 0 : index
    %4 = vector.load %arg2[%c0_2, %c0_3] : memref<8x1xi32, #tpu.memory_space<vmem>>, vector<8x1xi32>
    %cst = arith.constant dense<0xFF800000> : vector<8xf32>
    %5 = vector.multi_reduction <maximumf>, %3, %cst [1] : vector<8x8xf32> to vector<8xf32>
    %6 = vector.shape_cast %5 : vector<8xf32> to vector<8x1xf32>
    %7 = vector.broadcast %6 : vector<8x1xf32> to vector<8x8xf32>
    %8 = arith.subf %3, %7 : vector<8x8xf32>
    %9 = math.exp %8 : vector<8x8xf32>
    %cst_4 = arith.constant dense<0.000000e+00> : vector<8xf32>
    %10 = vector.multi_reduction <add>, %9, %cst_4 [1] : vector<8x8xf32> to vector<8xf32>
    %11 = vector.shape_cast %10 : vector<8xf32> to vector<8x1xf32>
    %12 = math.log %11 : vector<8x1xf32>
    %13 = arith.addf %6, %12 : vector<8x1xf32>
    %14 = tpu.iota {dimensions = array<i32: 1>} : vector<8x8xi32>
    %15 = vector.broadcast %4 : vector<8x1xi32> to vector<8x8xi32>
    %16 = arith.cmpi eq, %14, %15 : vector<8x8xi32>
    %cst_5 = arith.constant 0.000000e+00 : f32
    %17 = vector.broadcast %cst_5 : f32 to vector<8x8xf32>
    %18 = arith.select %16, %3, %17 : vector<8x8xi1>, vector<8x8xf32>
    %cst_6 = arith.constant dense<0.000000e+00> : vector<8xf32>
    %19 = vector.multi_reduction <add>, %18, %cst_6 [1] : vector<8x8xf32> to vector<8xf32>
    %20 = vector.shape_cast %19 : vector<8xf32> to vector<8x1xf32>
    %21 = arith.subf %13, %20 : vector<8x1xf32>
    %c8_i32 = arith.constant 8 : i32
    %22 = arith.muli %arg0, %c8_i32 : i32
    %23 = tpu.iota {dimensions = array<i32: 0>} : vector<8x1xi32>
    %24 = vector.broadcast %22 : i32 to vector<8x1xi32>
    %25 = arith.addi %24, %23 : vector<8x1xi32>
    %c16_i32 = arith.constant 16 : i32
    %26 = vector.broadcast %c16_i32 : i32 to vector<8x1xi32>
    %27 = arith.cmpi slt, %25, %26 : vector<8x1xi32>
    %cst_7 = arith.constant 0.000000e+00 : f32
    %28 = vector.broadcast %cst_7 : f32 to vector<8x1xf32>
    %29 = arith.select %27, %21, %28 : vector<8x1xi1>, vector<8x1xf32>
    %c0_8 = arith.constant 0 : index
    %c0_9 = arith.constant 0 : index
    %30 = vector.load %arg4[%c0_8, %c0_9] : memref<1x1xf32, #tpu.memory_space<vmem>>, vector<1x1xf32>
    %cst_10 = arith.constant dense<0.000000e+00> : vector<1xf32>
    %31 = vector.multi_reduction <add>, %29, %cst_10 [0] : vector<8x1xf32> to vector<1xf32>
    %32 = vector.shape_cast %31 : vector<1xf32> to vector<1x1xf32>
    %33 = arith.addf %30, %32 : vector<1x1xf32>
    %c0_11 = arith.constant 0 : index
    %c0_12 = arith.constant 0 : index
    %34 = vector.load %arg4[%c0_11, %c0_12] : memref<1x1xf32, #tpu.memory_space<vmem>>, vector<1x1xf32>
    tpu.vector_store %arg4[%c0_11, %c0_12], %33 {strides = array<i32>} : memref<1x1xf32, #tpu.memory_space<vmem>>, vector<1x1xf32>,
    %c1_i32 = arith.constant 1 : i32
    %35 = arith.cmpi eq, %arg0, %c1_i32 : i32
    %36 = arith.extui %35 : i1 to i32
    %c0_i32_13 = arith.constant 0 : i32
    %37 = arith.cmpi ne, %36, %c0_i32_13 : i32
    scf.if %37 {
      %c0_14 = arith.constant 0 : index
      %c0_15 = arith.constant 0 : index
      %38 = vector.load %arg4[%c0_14, %c0_15] : memref<1x1xf32, #tpu.memory_space<vmem>>, vector<1x1xf32>
      %cst_16 = arith.constant 1.600000e+01 : f32
      %39 = vector.broadcast %cst_16 : f32 to vector<1x1xf32>
      %40 = arith.divf %38, %39 : vector<1x1xf32>
      %cst_17 = arith.constant 0.000000e+00 : f32
      %41 = vector.broadcast %cst_17 : f32 to vector<1x1xf32>
      %42 = arith.subf %41, %40 : vector<1x1xf32>
      %43 = math.exp %42 : vector<1x1xf32>
      %cst_18 = arith.constant 1.000000e+00 : f32
      %44 = vector.broadcast %cst_18 : f32 to vector<1x1xf32>
      %45 = arith.subf %44, %43 : vector<1x1xf32>
      %46 = arith.mulf %45, %45 : vector<1x1xf32>
      %cst_19 = arith.constant 1.000000e+00 : f32
      %47 = vector.broadcast %cst_19 : f32 to vector<1x1xf32>
      %48 = arith.mulf %47, %46 : vector<1x1xf32>
      %49 = arith.mulf %48, %40 : vector<1x1xf32>
      %c0_20 = arith.constant 0 : index
      %c0_21 = arith.constant 0 : index
      %50 = vector.load %arg3[%c0_20, %c0_21] : memref<1x1xf32, #tpu.memory_space<vmem>>, vector<1x1xf32>
      tpu.vector_store %arg3[%c0_20, %c0_21], %49 {strides = array<i32>} : memref<1x1xf32, #tpu.memory_space<vmem>>, vector<1x1xf32>,
    } else {
    }
    return
  }
  func.func @transform_0(%arg0: i32) -> (i32, i32) {
    %c0_i32 = arith.constant 0 : i32
    %c0_i32_0 = arith.constant 0 : i32
    return %arg0, %c0_i32 : i32, i32
  }
  func.func @transform_1(%arg0: i32) -> (i32, i32) {
    %c0_i32 = arith.constant 0 : i32
    %c0_i32_0 = arith.constant 0 : i32
    return %arg0, %c0_i32 : i32, i32
  }
  func.func @transform_2(%arg0: i32) -> (i32, i32) {
    %c0_i32 = arith.constant 0 : i32
    %c0_i32_0 = arith.constant 0 : i32
    %c0_i32_1 = arith.constant 0 : i32
    return %c0_i32, %c0_i32_0 : i32, i32
  }
}

</mosaic_0001>

<llo_original>
// kernel: tpu_custom_call.1
$region0: #{tpu_custom_call.1}
  #allocation0 [shape = 'u32[]', space=smem, size = 0x4, offset = 0x4, fixed_abs, tag = 'smem constant byte address 0x4 - core index']
  #allocation1 [shape = 'u32[144,128]{1,0:T(1,128)}', space=vmem, size = 0x12000, scoped, tag = 'internal scratch']
  #allocation2 [shape = 'f32[1,1]{1,0:T(1,128)}', space=vmem, size = 0x200, scoped, tag = 'scratch operand']
  %s0 = inlined_call_operand.vmem [shape: f32[16,8], index: 0, kind: input, shape index: {}]
  %s1 = inlined_call_operand.vmem [shape: s32[16,1], index: 1, kind: input, shape index: {}]
  %s2 = inlined_call_operand.hbm [shape: f32[1,1], index: 2, kind: output, shape index: {}]
  %s3 = sld [smem:[#allocation0]]
  $region49: #{tpu_custom_call.1} parent=0
    _
  %s5 = ssub.s32 1, %s3
  %s6 = scalar_select 0, %s5, %s3
  $region1: #{tpu_custom_call.1} parent=0
    #allocation3 [shape = 'u8[512]{0}', space=vmem, size = 0x400, scoped, tag = 'output window, operand 0, single buffered']
    #allocation4 [shape = 's32[2]{0}', space=sflag, size = 0x8, scoped, tag = 'scoped memory for tpu_custom_call.1']
    %7 = vsyncpa [#allocation4], 0
    loop: start=0, step=1, limit=4
    $region2: #{tpu_custom_call.1} parent=1 // loop_pre_header
      _
    $region3: #{tpu_custom_call.1} parent=1 // loop_header
      %s9 = sphi 0, %s13
      %p10 = scmp.ge.s32.totalorder %s9, 4
      %s19 = sphi 0, %s21
      %s22 = sphi 0, %s19
      %s23 = sphi 0, %s22
      %s39 = sphi 0, %s23
      %s45 = sphi 0, %s47
      %s48 = sphi 0, %s45
      %s49 = sphi 0, %s48
      %s65 = sphi 0, %s49
      %s69 = sphi 0, %s69
      %s71 = sphi 0, %s69
      %s72 = sphi 0, %s71
      %s86 = sphi 0, %s72
    $region4: #{tpu_custom_call.1} parent=1 // loop_header_branch
      %12 = sbr.rel (%p10) target = $region8
    $region5: #{tpu_custom_call.1} parent=1 // loop_body
      %s14 = ssub.s32 %s9, 1
      %s15 = ssub.s32 %s9, 2
      %s16 = sadd.s32 %s9, 1
      %s17 = ssub.s32 %s9, %s16
      %p18 = scmp.eq.s32.totalorder %s17, 0
      %s20 = sadd.s32 %s19, 1
      %s21 = scalar_select %p18, %s19, %s20
      %p24 = pneg %p18
      %p25 = scmp.eq.s32.totalorder %s9, 1
      %p26 = por %p24, %p25
      %p27 = scmp.ne.s32.totalorder %s19, %s22
      %p28 = scmp.eq.s32.totalorder %s9, 0
      %p29 = por %p27, %p28
      %p30 = scmp.ne.s32.totalorder %s19, %s22
      %p31 = scmp.eq.s32.totalorder %s14, 1
      %p32 = por %p30, %p31
      %p33 = scmp.ne.s32.totalorder %s22, %s23
      %p34 = scmp.eq.s32.totalorder %s14, 0
      %p35 = por %p33, %p34
      %p36 = scmp.ne.s32.totalorder %s22, %s23
      %p37 = scmp.eq.s32.totalorder %s15, 1
      %p38 = por %p36, %p37
      %p40 = scmp.ne.s32.totalorder %s23, %s39
      %p41 = scmp.eq.s32.totalorder %s15, 0
      %p42 = por %p40, %p41
      %s43 = ssub.s32 %s9, %s16
      %p44 = scmp.eq.s32.totalorder %s43, 0
      %s46 = sadd.s32 %s45, 1
      %s47 = scalar_select %p44, %s45, %s46
      %p50 = pneg %p44
      %p51 = scmp.eq.s32.totalorder %s9, 1
      %p52 = por %p50, %p51
      %p53 = scmp.ne.s32.totalorder %s45, %s48
      %p54 = scmp.eq.s32.totalorder %s9, 0
      %p55 = por %p53, %p54
      %p56 = scmp.ne.s32.totalorder %s45, %s48
      %p57 = scmp.eq.s32.totalorder %s14, 1
      %p58 = por %p56, %p57
      %p59 = scmp.ne.s32.totalorder %s48, %s49
      %p60 = scmp.eq.s32.totalorder %s14, 0
      %p61 = por %p59, %p60
      %p62 = scmp.ne.s32.totalorder %s48, %s49
      %p63 = scmp.eq.s32.totalorder %s15, 1
      %p64 = por %p62, %p63
      %p66 = scmp.ne.s32.totalorder %s49, %s65
      %p67 = scmp.eq.s32.totalorder %s15, 0
      %p68 = por %p66, %p67
      %s70 = sadd.s32 %s69, 1
      %p73 = scmp.eq.s32.totalorder %s9, 1
      %p74 = scmp.ne.s32.totalorder %s69, %s71
      %p75 = scmp.eq.s32.totalorder %s9, 0
      %p76 = por %p74, %p75
      %p77 = scmp.ne.s32.totalorder %s69, %s71
      %p78 = scmp.eq.s32.totalorder %s14, 1
      %p79 = por %p77, %p78
      %p80 = scmp.ne.s32.totalorder %s71, %s72
      %p81 = scmp.eq.s32.totalorder %s14, 0
      %p82 = por %p80, %p81
      %p83 = scmp.ne.s32.totalorder %s71, %s72
      %p84 = scmp.eq.s32.totalorder %s15, 1
      %p85 = por %p83, %p84
      %p87 = scmp.ne.s32.totalorder %s72, %s86
      %p88 = scmp.eq.s32.totalorder %s15, 0
      %p89 = por %p87, %p88
      %p90 = scmp.le.s32.totalorder 1, %s9
      %p91 = scmp.lt.s32.totalorder %s9, 3
      %p92 = pnand %p90, %p91
      %p93 = pneg %p92
      // Predicated region
      $region9: #{tpu_custom_call.1} parent=5 // pred_check
        _
      $region10: #{tpu_custom_call.1} parent=5 // pred_check_branch
        %95 = sbr.rel (%p92) target = $region12
      $region11: #{tpu_custom_call.1} parent=5 // pred_region
        %s96 = ssub.s32 %s9, 1
      $region12: #{tpu_custom_call.1} parent=5 // pred_fallthru
        _
      %p97 = scmp.lt.s32.totalorder %s9, 2
      // Predicated region
      $region13: #{tpu_custom_call.1} parent=5 // pred_check
        %p98 = pneg %p97
      $region14: #{tpu_custom_call.1} parent=5 // pred_check_branch
        %100 = sbr.rel (%p98) target = $region16
      $region15: #{tpu_custom_call.1} parent=5 // pred_region
        // Predicated region
        $region17: #{tpu_custom_call.1} parent=15 // pred_check
          %p101 = pneg %p29
        $region18: #{tpu_custom_call.1} parent=15 // pred_check_branch
          %103 = sbr.rel (%p101) target = $region20
        $region19: #{tpu_custom_call.1} parent=15 // pred_region
          %p104 = scmp.lt.s32.totalorder %s9, 1
          %s105 = scalar_select %p104, %s9, 1
          %s106 = smul.addr %s105, 8
          %s107 = scalar_lea.vmem %s0, %s106
        $region20: #{tpu_custom_call.1} parent=15 // pred_fallthru
          _
        // Predicated region
        $region21: #{tpu_custom_call.1} parent=15 // pred_check
          %p108 = pneg %p55
        $region22: #{tpu_custom_call.1} parent=15 // pred_check_branch
          %110 = sbr.rel (%p108) target = $region24
        $region23: #{tpu_custom_call.1} parent=15 // pred_region
          %p111 = scmp.lt.s32.totalorder %s9, 1
          %s112 = scalar_select %p111, %s9, 1
          %s113 = smul.addr %s112, 8
          %s114 = scalar_lea.vmem %s1, %s113
        $region24: #{tpu_custom_call.1} parent=15 // pred_fallthru
          _
      $region16: #{tpu_custom_call.1} parent=5 // pred_fallthru
        _
      %p115 = scmp.le.s32.totalorder 1, %s9
      %p116 = scmp.lt.s32.totalorder %s9, 3
      %p117 = pnand %p115, %p116
      %p118 = pneg %p117
      // Predicated region
      $region25: #{tpu_custom_call.1} parent=5 // pred_check
        _
      $region26: #{tpu_custom_call.1} parent=5 // pred_check_branch
        %120 = sbr.rel (%p117) target = $region28
      $region27: #{tpu_custom_call.1} parent=5 // pred_region
        %s121 = ssub.s32 %s9, 1
        %p122 = scmp.lt.s32.totalorder %s14, 1
        %s123 = scalar_select %p122, %s14, 1
        %s124 = smul.addr %s123, 8
        %s125 = scalar_lea.vmem %s0, %s124
        %p126 = pneg %p35
        %p127 = pneg %p32
        %p128 = scmp.lt.s32.totalorder %s14, 1
        %s129 = scalar_select %p128, %s14, 1
        %s130 = smul.addr %s129, 8
        %s131 = scalar_lea.vmem %s1, %s130
        %p132 = pneg %p61
        %p133 = pneg %p58
        %p134 = pneg %p82
        %p135 = pneg %p79
        %p136 = scmp.lt.s32.totalorder %s14, 1
        %s137 = scalar_select %p136, %s14, 1
        %s138 = smul.addr %s137, 8
        %s139 = scalar_lea.vmem %s0, %s138
        %p140 = scmp.lt.s32.totalorder %s14, 1
        %s141 = scalar_select %p140, %s14, 1
        %s142 = smul.addr %s141, 8
        %s143 = scalar_lea.vmem %s1, %s142
        %p144 = scmp.eq.s32.totalorder %s14, 0
        // Predicated region
        $region29: #{tpu_custom_call.1} parent=27 // pred_check
          %p145 = pneg %p144
        $region30: #{tpu_custom_call.1} parent=27 // pred_check_branch
          %147 = sbr.rel (%p145) target = $region32
        $region31: #{tpu_custom_call.1} parent=27 // pred_region
          %vm148 = vcmask 0
          %149 = vst.msk [vmem:[#allocation2] sm:$0x1] %vm148, 0.0
        $region32: #{tpu_custom_call.1} parent=27 // pred_fallthru
          _
        %v150 = vld [vmem:[%s139] sm:$0xff]
        %v151 = vld [vmem:[%s143] sm:$0xff]
        %vm152 = vcmask 64512
        %v153 = vsel %vm152, %v150, -inf
        %154 = vmax.xlane.f32.xlu0 %v153
        %v155 = vpop.xlane.xlu0 %154
        %v156 = vsub.f32 %v150, %v155
        %v157 = vmul.f32 %v156, 1.442695
        %v158 = vpow.pop %v157
        %v159 = vsel %vm152, %v158, 0.0
        %160 = vadd.xlane.f32.xlu0 %v159
        %v161 = vpop.xlane.xlu0 %160
        %v162 = vlog2.pop %v161
        %v163 = vmul.f32 %v162, 0.6931472
        %v164 = vadd.f32 %v155, %v163
        %v165 = vlaneseq
        %v166 = vand.u32 %v165, 127
        %167 = vset.pattern.permute.xlu0 0
        %168 = vperm.xlu0 %167, %v151
        %v169 = vpop.permute.xlu0 %168
        %vm170 = vcmp.eq.s32.totalorder %v166, %v169
        %v171 = vsel %vm170, %v150, 0.0
        %v172 = vsel %vm152, %v171, 0.0
        %173 = vadd.xlane.f32.xlu0 %v172
        %v174 = vpop.xlane.xlu0 %173
        %v175 = vsub.f32 %v164, %v174
        %s176 = smul.u32 %s14, 8
        %v177 = vlaneseq
        %v178 = vshrl.u32 %v177, 7
        %v179 = vstv %s176
        %v180 = vadd.s32 %v179, %v178
        %vm181 = vcmp.lt.s32.totalorder %v180, 16
        %v182 = vsel %vm181, %v175, 0.0
        %v183 = vld [vmem:[#allocation2] sm:$0x1]
        %v184 = vrot.slane %v182, 4
        %v185 = vadd.f32 %v182, %v184
        %v186 = vrot.slane %v185, 2
        %v187 = vadd.f32 %v185, %v186
        %v188 = vrot.slane %v187, 1
        %v189 = vadd.f32 %v187, %v188
        %v190 = vadd.f32 %v183, %v189
        %vm191 = vcmask 0
        %192 = vst.msk [vmem:[#allocation2] sm:$0x1] %vm191, %v190
        %p193 = scmp.eq.s32.totalorder %s14, 1
        // Predicated region
        $region33: #{tpu_custom_call.1} parent=27 // pred_check
          %p194 = pneg %p193
        $region34: #{tpu_custom_call.1} parent=27 // pred_check_branch
          %196 = sbr.rel (%p194) target = $region36
        $region35: #{tpu_custom_call.1} parent=27 // pred_region
          %v197 = vld [vmem:[#allocation2] sm:$0x1]
          %v198 = vrcp.pop 16.0
          %v199 = vmul.f32 %v197, %v198
          %v200 = vsub.f32 0.0, %v199
          %v201 = vmul.f32 %v200, 1.442695
          %v202 = vpow.pop %v201
          %v203 = vsub.f32 1.0, %v202
          %v204 = vmul.f32 %v203, %v203
          %v205 = vmul.f32 %v204, %v199
          %206 = vst.msk [vmem:[#allocation3] sm:$0x1] %vm191, %v205
        $region36: #{tpu_custom_call.1} parent=27 // pred_fallthru
          _
        // Predicated region
        $region37: #{tpu_custom_call.1} parent=27 // pred_check
          %p207 = pneg %p79
        $region38: #{tpu_custom_call.1} parent=27 // pred_check_branch
          %209 = sbr.rel (%p207) target = $region40
        $region39: #{tpu_custom_call.1} parent=27 // pred_region
          %s211 = ssub.s32 16, 16
          %212 = vsyncadd [#allocation4], %s211
          %s214 = sshll.u32 [#allocation3], 4
          %s215 = int_to_ptr.vmem [resolvable:$true] %s214
          %217 = dma.vmem_to_hbm [thread:$0]  %s215, 16, %s2, [#allocation4]
        $region40: #{tpu_custom_call.1} parent=27 // pred_fallthru
          _
        // Predicated region
        $region41: #{tpu_custom_call.1} parent=27 // pred_check
          %p218 = pneg %p79
        $region42: #{tpu_custom_call.1} parent=27 // pred_check_branch
          %220 = sbr.rel (%p218) target = $region44
        $region43: #{tpu_custom_call.1} parent=27 // pred_region
          %221 = dma.done [#allocation4], 16
        $region44: #{tpu_custom_call.1} parent=27 // pred_fallthru
          _
      $region28: #{tpu_custom_call.1} parent=5 // pred_fallthru
        _
      %p222 = scmp.le.s32.totalorder 2, %s9
      // Predicated region
      $region45: #{tpu_custom_call.1} parent=5 // pred_check
        %p223 = pneg %p222
      $region46: #{tpu_custom_call.1} parent=5 // pred_check_branch
        %225 = sbr.rel (%p223) target = $region48
      $region47: #{tpu_custom_call.1} parent=5 // pred_region
        %s226 = ssub.s32 %s9, 2
      $region48: #{tpu_custom_call.1} parent=5 // pred_fallthru
        _
    $region6: #{tpu_custom_call.1} parent=1 // loop_footer
      %s13 = sadd.s32 1, %s9
    $region7: #{tpu_custom_call.1} parent=1 // loop_footer_branch
      %8 = sbr.rel target = $region3
    $region8: #{tpu_custom_call.1} parent=1 // loop_exit
      _
    %227 = vsyncpa [#allocation4], 1
    %s228 = scalar_lea.sflag [#allocation4], 1
    %229 = vsyncpa %s228, 1

</llo_original>
